<compile_context>
chip_gen: v7x
topology: tpu7x:2x2x1
jax: 0.10.0
libtpu: 0.0.40
codegen_flags: <defaults>
</compile_context>

<pallas_src>
import functools

import jax
import jax.numpy as jnp
from jax.experimental import pallas as pl
from jax.experimental.pallas import tpu as pltpu

OUT_DIM = 5          # fixed by the PyTorch module (self.output_dim = 5)
LANE = 128
SUBLANE = 8
NEG_PAD = -1e30      # pad-lane bias: exp(NEG_PAD - m) underflows to exactly 0 in f32


def _round_up(n, m):
    return ((n + m - 1) // m) * m


def ffnn_kernel(x_ref, w1_ref, b1_ref, w2_ref, b2_ref, o_ref):
    """One batch tile: (tb, D) -> (tb, OUT_PAD) log-probabilities."""
    # MXU operands in bf16, accumulation + all elementwise math in f32.
    x = x_ref[...].astype(jnp.bfloat16)
    h = jnp.dot(x, w1_ref[...], preferred_element_type=jnp.float32) + b1_ref[...]
    h = jnp.maximum(h, 0.0)
    logits = (
        jnp.dot(h.astype(jnp.bfloat16), w2_ref[...],
                preferred_element_type=jnp.float32)
        + b2_ref[...]
    )
    # Numerically stable log-softmax over the narrow (8-wide) logit dim.
    # Pad lanes carry a -1e30 bias: they never win the max and contribute exactly 0
    # to the logsumexp, so real lanes are exactly log_softmax of the 5 real logits.
    m = jnp.max(logits, axis=-1, keepdims=True)
    z = logits - m
    lse = jnp.log(jnp.sum(jnp.exp(z), axis=-1, keepdims=True))
    o_ref[...] = (z - lse).astype(o_ref.dtype)


def prepare_ffnn_params(w1, b1, w2, b2):
    """One-time weight reformatting (transpose, pad, bf16 cast).

    w1: (H, D), b1: (H,)   -- PyTorch nn.Linear layout (out_features, in_features)
    w2: (OUT, H), b2: (OUT,)
    Returns (w1_t, b1_p, w2_t, b2_p) ready for ffnn_forward.
    """
    H, D = w1.shape
    out_dim = w2.shape[0]
    h_pad = _round_up(H, LANE)          # hidden padded to a lane multiple
    out_pad = _round_up(out_dim, SUBLANE)  # 5 -> 8 (narrow output, not 128)

    # (in, out) layout so the kernel computes y = x @ W + b; zero-padded hidden
    # columns/rows are exact no-ops through ReLU and the second matmul.
    w1_t = jnp.zeros((D, h_pad), jnp.bfloat16).at[:, :H].set(w1.T.astype(jnp.bfloat16))
    b1_p = jnp.zeros((1, h_pad), jnp.float32).at[:, :H].set(b1.astype(jnp.float32))
    w2_t = jnp.zeros((h_pad, out_pad), jnp.bfloat16).at[:H, :out_dim].set(
        w2.T.astype(jnp.bfloat16))
    # Pad-lane bias is hugely negative so the log-softmax ignores those lanes.
    b2_p = jnp.full((1, out_pad), NEG_PAD, jnp.float32).at[:, :out_dim].set(
        b2.astype(jnp.float32))
    return w1_t, b1_p, w2_t, b2_p


@functools.partial(jax.jit, static_argnames=("out_dim", "tile_b"))
def ffnn_forward(x, w1_t, b1_p, w2_t, b2_p, *, out_dim=OUT_DIM, tile_b=2048):
    """Forward pass: x (B, D) f32 -> (B, out_dim) f32 log-probabilities."""
    B, D = x.shape
    h_pad = w1_t.shape[1]
    out_pad = w2_t.shape[1]

    # Batch tile choice:
    #   * tiny batches: one grid step (rounded up to a sublane multiple).
    #   * larger batches: at least 2 grid steps so the "parallel" batch axis can
    #     shard across both TensorCores on v7x, capped at tile_b (default 2048,
    #     which fits v5e's 16 MiB scoped-VMEM default; sweep higher on v6e).
    if B <= 2 * SUBLANE:
        tb = _round_up(B, SUBLANE)
    else:
        tb = min(tile_b, _round_up(pl.cdiv(B, 2), SUBLANE))
    grid = (pl.cdiv(B, tb),)   # ragged last block handled by Pallas edge masking

    # Advisory cost hint for XLA scheduling around the custom call.
    cost = pl.CostEstimate(
        flops=2 * B * D * h_pad + 2 * B * h_pad * out_pad,
        transcendentals=B * (out_pad + 1),
        bytes_accessed=(B * D * 4                      # x in
                        + B * out_pad * 4              # out
                        + (w1_t.size + w2_t.size) * 2  # bf16 weights
                        + (b1_p.size + b2_p.size) * 4),
    )

    out = pl.pallas_call(
        ffnn_kernel,
        out_shape=jax.ShapeDtypeStruct((B, out_pad), jnp.float32),
        grid_spec=pltpu.PrefetchScalarGridSpec(
            num_scalar_prefetch=0,
            grid=grid,
            in_specs=[
                pl.BlockSpec((tb, D), lambda i: (i, 0)),           # x: tiled over batch
                pl.BlockSpec((D, h_pad), lambda i: (0, 0)),        # weights/biases stay
                pl.BlockSpec((1, h_pad), lambda i: (0, 0)),        #   VMEM-resident
                pl.BlockSpec((h_pad, out_pad), lambda i: (0, 0)),  #   across grid
                pl.BlockSpec((1, out_pad), lambda i: (0, 0)),      #   steps
            ],
            out_specs=pl.BlockSpec((tb, out_pad), lambda i: (i, 0)),
        ),
        compiler_params=pltpu.CompilerParams(
            dimension_semantics=("parallel",),  # batch grid shards across TCs on v7x
        ),
        cost_estimate=cost,
    )(x, w1_t, b1_p, w2_t, b2_p)

    # Drop the 3 pad lanes (32 B/row kernel output; the old version wrote 512 B/row).
    return out[:, :out_dim]


def reference_forward_f32(x, w1, b1, w2, b2):
    h = jnp.maximum(x @ w1.T + b1, 0.0)
    logits = h @ w2.T + b2
    return jax.nn.log_softmax(logits, axis=-1)


def reference_forward_bf16(x, w1, b1, w2, b2):
    # Mirrors the kernel arithmetic: bf16 MXU operands, f32 accumulation/elementwise.
    h = jnp.dot(x.astype(jnp.bfloat16), w1.T.astype(jnp.bfloat16),
                preferred_element_type=jnp.float32) + b1
    h = jnp.maximum(h, 0.0)
    logits = jnp.dot(h.astype(jnp.bfloat16), w2.T.astype(jnp.bfloat16),
                     preferred_element_type=jnp.float32) + b2
    return jax.nn.log_softmax(logits, axis=-1)


if __name__ == "__main__":
    # Small shapes consistent with the module: FFNN(input_dim=32, h=64).
    D, H = 32, 64

    key = jax.random.PRNGKey(0)
    kx, kw1, kb1, kw2, kb2, kx2 = jax.random.split(key, 6)

    # Deterministic PyTorch-Linear-style init, stored in PyTorch (out, in) layout.
    bound1 = 1.0 / jnp.sqrt(D)
    bound2 = 1.0 / jnp.sqrt(H)
    w1 = jax.random.uniform(kw1, (H, D), jnp.float32, -bound1, bound1)
    b1 = jax.random.uniform(kb1, (H,), jnp.float32, -bound1, bound1)
    w2 = jax.random.uniform(kw2, (OUT_DIM, H), jnp.float32, -bound2, bound2)
    b2 = jax.random.uniform(kb2, (OUT_DIM,), jnp.float32, -bound2, bound2)

    # One-time weight reformatting (hoisted out of the forward path).
    params = jax.block_until_ready(prepare_ffnn_params(w1, b1, w2, b2))

    # --- primary check: batch=8 (single grid step) ---
    B = 8
    x = jax.random.normal(kx, (B, D), jnp.float32)
    out = jax.block_until_ready(ffnn_forward(x, *params))
    assert out.shape == (B, OUT_DIM)
    assert bool(jnp.all(jnp.isfinite(out))), "non-finite values in output"
    assert jnp.allclose(out, reference_forward_bf16(x, w1, b1, w2, b2),
                        atol=1e-3, rtol=1e-3), "mismatch vs bf16-operand reference"
    assert jnp.allclose(out, reference_forward_f32(x, w1, b1, w2, b2),
                        atol=5e-2, rtol=5e-2), "mismatch vs f32 reference"

    # --- secondary check: batch=32 -> 2 grid steps (megacore-friendly path) ---
    B2 = 32
    x2 = jax.random.normal(kx2, (B2, D), jnp.float32)
    out2 = jax.block_until_ready(ffnn_forward(x2, *params))
    assert out2.shape == (B2, OUT_DIM)
    assert jnp.allclose(out2, reference_forward_bf16(x2, w1, b1, w2, b2),
                        atol=1e-3, rtol=1e-3), "multi-step: mismatch vs bf16 reference"
    assert jnp.allclose(out2, reference_forward_f32(x2, w1, b1, w2, b2),
                        atol=5e-2, rtol=5e-2), "multi-step: mismatch vs f32 reference"

    # TODO(synk): compute_Loss (NLLLoss) is a training-time op, not part of forward.
    print("KERNEL_OK")
</pallas_src>

<mosaic_0001>
module attributes {stable_mosaic.version = 11 : i64} {
  func.func @ffnn_kernel(%arg0: i32, %arg1: memref<8x32xf32, #tpu.memory_space<vmem>>, %arg2: memref<32x128xbf16, #tpu.memory_space<vmem>>, %arg3: memref<1x128xf32, #tpu.memory_space<vmem>>, %arg4: memref<128x8xbf16, #tpu.memory_space<vmem>>, %arg5: memref<1x8xf32, #tpu.memory_space<vmem>>, %arg6: memref<8x8xf32, #tpu.memory_space<vmem>>) attributes {dimension_semantics = [#tpu.dimension_semantics<parallel>], iteration_bounds = array<i64: 1>, scalar_prefetch = 0 : i64, scratch_operands = 0 : i64, tpu.core_type = #tpu.core_type<tc>, window_params = [{transform_indices = @transform_0, window_bounds = array<i64: 8, 32>}, {pipeline_mode = #tpu.pipeline_mode<synchronous>, transform_indices = @transform_1, window_bounds = array<i64: 32, 128>}, {pipeline_mode = #tpu.pipeline_mode<synchronous>, transform_indices = @transform_2, window_bounds = array<i64: 1, 128>}, {pipeline_mode = #tpu.pipeline_mode<synchronous>, transform_indices = @transform_3, window_bounds = array<i64: 128, 8>}, {pipeline_mode = #tpu.pipeline_mode<synchronous>, transform_indices = @transform_4, window_bounds = array<i64: 1, 8>}, {transform_indices = @transform_5, window_bounds = array<i64: 8, 8>}]} {
    %c0 = arith.constant 0 : index
    %c0_0 = arith.constant 0 : index
    %0 = vector.load %arg1[%c0, %c0_0] : memref<8x32xf32, #tpu.memory_space<vmem>>, vector<8x32xf32>
    %1 = arith.truncf %0 : vector<8x32xf32> to vector<8x32xbf16>
    %c0_1 = arith.constant 0 : index
    %c0_2 = arith.constant 0 : index
    %2 = vector.load %arg2[%c0_1, %c0_2] : memref<32x128xbf16, #tpu.memory_space<vmem>>, vector<32x128xbf16>
    %cst = arith.constant dense<0.000000e+00> : vector<8x128xf32>
    %3 = tpu.matmul %1, %2, %cst {dimension_numbers = #tpu.dot_dimension_numbers<[1], [0], [0], [1], [0, 0, 1, 1], [], []>} : vector<8x32xbf16>, vector<32x128xbf16>, vector<8x128xf32> -> vector<8x128xf32>
    %c0_3 = arith.constant 0 : index
    %c0_4 = arith.constant 0 : index
    %4 = vector.load %arg3[%c0_3, %c0_4] : memref<1x128xf32, #tpu.memory_space<vmem>>, vector<1x128xf32>
    %5 = vector.broadcast %4 : vector<1x128xf32> to vector<8x128xf32>
    %6 = arith.addf %3, %5 : vector<8x128xf32>
    %cst_5 = arith.constant 0.000000e+00 : f32
    %7 = vector.broadcast %cst_5 : f32 to vector<8x128xf32>
    %8 = arith.maximumf %6, %7 : vector<8x128xf32>
    %9 = arith.truncf %8 : vector<8x128xf32> to vector<8x128xbf16>
    %c0_6 = arith.constant 0 : index
    %c0_7 = arith.constant 0 : index
    %10 = vector.load %arg4[%c0_6, %c0_7] : memref<128x8xbf16, #tpu.memory_space<vmem>>, vector<128x8xbf16>
    %cst_8 = arith.constant dense<0.000000e+00> : vector<8x8xf32>
    %11 = tpu.matmul %9, %10, %cst_8 {dimension_numbers = #tpu.dot_dimension_numbers<[1], [0], [0], [1], [0, 0, 1, 1], [], []>} : vector<8x128xbf16>, vector<128x8xbf16>, vector<8x8xf32> -> vector<8x8xf32>
    %c0_9 = arith.constant 0 : index
    %c0_10 = arith.constant 0 : index
    %12 = vector.load %arg5[%c0_9, %c0_10] : memref<1x8xf32, #tpu.memory_space<vmem>>, vector<1x8xf32>
    %13 = vector.broadcast %12 : vector<1x8xf32> to vector<8x8xf32>
    %14 = arith.addf %11, %13 : vector<8x8xf32>
    %cst_11 = arith.constant dense<0xFF800000> : vector<8xf32>
    %15 = vector.multi_reduction <maximumf>, %14, %cst_11 [1] : vector<8x8xf32> to vector<8xf32>
    %16 = vector.shape_cast %15 : vector<8xf32> to vector<8x1xf32>
    %17 = vector.broadcast %16 : vector<8x1xf32> to vector<8x8xf32>
    %18 = arith.subf %14, %17 : vector<8x8xf32>
    %19 = math.exp %18 : vector<8x8xf32>
    %cst_12 = arith.constant dense<0.000000e+00> : vector<8xf32>
    %20 = vector.multi_reduction <add>, %19, %cst_12 [1] : vector<8x8xf32> to vector<8xf32>
    %21 = vector.shape_cast %20 : vector<8xf32> to vector<8x1xf32>
    %22 = math.log %21 : vector<8x1xf32>
    %23 = vector.broadcast %22 : vector<8x1xf32> to vector<8x8xf32>
    %24 = arith.subf %18, %23 : vector<8x8xf32>
    %c0_13 = arith.constant 0 : index
    %c0_14 = arith.constant 0 : index
    %25 = vector.load %arg6[%c0_13, %c0_14] : memref<8x8xf32, #tpu.memory_space<vmem>>, vector<8x8xf32>
    tpu.vector_store %arg6[%c0_13, %c0_14], %24 {strides = array<i32>} : memref<8x8xf32, #tpu.memory_space<vmem>>, vector<8x8xf32>,
    return
  }
  func.func @transform_0(%arg0: i32) -> (i32, i32) {
    %c0_i32 = arith.constant 0 : i32
    %c0_i32_0 = arith.constant 0 : i32
    return %arg0, %c0_i32 : i32, i32
  }
  func.func @transform_1(%arg0: i32) -> (i32, i32) {
    %c0_i32 = arith.constant 0 : i32
    %c0_i32_0 = arith.constant 0 : i32
    %c0_i32_1 = arith.constant 0 : i32
    return %c0_i32, %c0_i32_0 : i32, i32
  }
  func.func @transform_2(%arg0: i32) -> (i32, i32) {
    %c0_i32 = arith.constant 0 : i32
    %c0_i32_0 = arith.constant 0 : i32
    %c0_i32_1 = arith.constant 0 : i32
    return %c0_i32, %c0_i32_0 : i32, i32
  }
  func.func @transform_3(%arg0: i32) -> (i32, i32) {
    %c0_i32 = arith.constant 0 : i32
    %c0_i32_0 = arith.constant 0 : i32
    %c0_i32_1 = arith.constant 0 : i32
    return %c0_i32, %c0_i32_0 : i32, i32
  }
  func.func @transform_4(%arg0: i32) -> (i32, i32) {
    %c0_i32 = arith.constant 0 : i32
    %c0_i32_0 = arith.constant 0 : i32
    %c0_i32_1 = arith.constant 0 : i32
    return %c0_i32, %c0_i32_0 : i32, i32
  }
  func.func @transform_5(%arg0: i32) -> (i32, i32) {
    %c0_i32 = arith.constant 0 : i32
    %c0_i32_0 = arith.constant 0 : i32
    return %arg0, %c0_i32 : i32, i32
  }
}

</mosaic_0001>

<llo_original>
// kernel: ffnn_forward.1
$region0: #{ffnn_forward.1}
  #allocation0 [shape = 'u32[]', space=smem, size = 0x4, offset = 0x4, fixed_abs, tag = 'smem constant byte address 0x4 - core index']
  #allocation1 [shape = 'u32[144,128]{1,0:T(1,128)}', space=vmem, size = 0x12000, scoped, tag = 'internal scratch']
  %s0 = inlined_call_operand.vmem [shape: f32[8,32], index: 0, kind: input, shape index: {}]
  %s1 = inlined_call_operand.vmem [shape: bf16[32,128], index: 1, kind: input, shape index: {}]
  %s2 = inlined_call_operand.vmem [shape: f32[1,128], index: 2, kind: input, shape index: {}]
  %s3 = inlined_call_operand.vmem [shape: bf16[128,8], index: 3, kind: input, shape index: {}]
  %s4 = inlined_call_operand.vmem [shape: f32[1,8], index: 4, kind: input, shape index: {}]
  %s5 = inlined_call_operand.hbm [shape: f32[8,8], index: 5, kind: output, shape index: {}]
  %s6 = sld [smem:[#allocation0]]
  $region30: #{ffnn_forward.1} parent=0
    _
  %s8 = ssub.s32 1, %s6
  %s9 = scalar_select 0, %s8, %s6
  $region1: #{ffnn_forward.1} parent=0
    #allocation2 [shape = 'u8[4096]{0}', space=vmem, size = 0x1000, scoped, tag = 'output window, operand 0, single buffered']
    #allocation3 [shape = 's32[1]{0}', space=sflag, size = 0x4, scoped, tag = 'scoped memory for ffnn_forward.1']
    %10 = vsyncpa [#allocation3], 0
    // Predicated region
    $region2: #{ffnn_forward.1} parent=1 // pred_check
      _
    $region3: #{ffnn_forward.1} parent=1 // pred_check_branch
      %12 = sbr.rel (0) target = $region5
    $region4: #{ffnn_forward.1} parent=1 // pred_region
      _
    $region5: #{ffnn_forward.1} parent=1 // pred_fallthru
      _
    // Predicated region
    $region6: #{ffnn_forward.1} parent=1 // pred_check
      _
    $region7: #{ffnn_forward.1} parent=1 // pred_check_branch
      %14 = sbr.rel (0) target = $region9
    $region8: #{ffnn_forward.1} parent=1 // pred_region
      _
    $region9: #{ffnn_forward.1} parent=1 // pred_fallthru
      _
    // Predicated region
    $region10: #{ffnn_forward.1} parent=1 // pred_check
      _
    $region11: #{ffnn_forward.1} parent=1 // pred_check_branch
      %16 = sbr.rel (0) target = $region13
    $region12: #{ffnn_forward.1} parent=1 // pred_region
      _
    $region13: #{ffnn_forward.1} parent=1 // pred_fallthru
      _
    // Predicated region
    $region14: #{ffnn_forward.1} parent=1 // pred_check
      _
    $region15: #{ffnn_forward.1} parent=1 // pred_check_branch
      %18 = sbr.rel (0) target = $region17
    $region16: #{ffnn_forward.1} parent=1 // pred_region
      _
    $region17: #{ffnn_forward.1} parent=1 // pred_fallthru
      _
    // Predicated region
    $region18: #{ffnn_forward.1} parent=1 // pred_check
      _
    $region19: #{ffnn_forward.1} parent=1 // pred_check_branch
      %20 = sbr.rel (0) target = $region21
    $region20: #{ffnn_forward.1} parent=1 // pred_region
      _
    $region21: #{ffnn_forward.1} parent=1 // pred_fallthru
      _
    %v22 = vld [vmem:[%s0] sm:$0xff]
    %v23 = vpack.c.bf16 %v22, %v22
    %v24 = vld [vmem:[%s1] sm:$0xf]
    %v25 = vld [vmem:[%s1 + $0x4] sm:$0xf]
    %v26 = vld [vmem:[%s1 + $0x8] sm:$0xf]
    %v27 = vld [vmem:[%s1 + $0xc] sm:$0xf]
    %v28 = vld [vmem:[%s2] sm:$0x1]
    %v30 = vlaneseq
    %v31 = vshrl.u32 %v30, 7
    %v32 = vsub.s32 0, %v31
    %v33 = vrot.slane %v28, %v32
    %v39 = vunpack.c.l.b16 %v24
    %v40 = vunpack.c.l.b16 %v25
    %v41 = vunpack.c.l.b16 %v26
    %v42 = vunpack.c.l.b16 %v27
    %v43 = vpack.c.b16 %v40, %v39
    %v44 = vpack.c.b16 %v42, %v41
    %vm47 = vcmask 261120
    %v49 = vsel %vm47, %v23, 0
    %51 = vmatprep.subr.bf16.mxu0 0
    %52 = vmatpush1.bf16.msra.mxu0 %v43
    %53 = vmatprep.subr.bf16.mxu0 0
    %54 = vmatpush1.bf16.msra.mxu0 %v44
    %55 = vmatprep.subr.bf16.mxu0 0
    %56 = vmatpush1.bf16.msra.mxu0 0
    %57 = vmatprep.subr.bf16.mxu0 0
    %58 = vmatpush1.bf16.msra.mxu0 0
    %59 = vmatprep.subr.bf16.mxu0 0
    %60 = vmatpush1.bf16.msra.mxu0 0
    %61 = vmatprep.subr.bf16.mxu0 0
    %62 = vmatpush1.bf16.msra.mxu0 0
    %63 = vmatprep.subr.bf16.mxu0 0
    %64 = vmatpush1.bf16.msra.mxu0 0
    %65 = vmatprep.subr.bf16.mxu0 0
    %66 = vmatpush1.bf16.msra.mxu0 0
    %67 = vmatprep.subr.bf16.mxu0 0
    %68 = vmatpush1.bf16.msra.mxu0 0
    %69 = vmatprep.subr.bf16.mxu0 0
    %70 = vmatpush1.bf16.msra.mxu0 0
    %71 = vmatprep.subr.bf16.mxu0 0
    %72 = vmatpush1.bf16.msra.mxu0 0
    %73 = vmatprep.subr.bf16.mxu0 0
    %74 = vmatpush1.bf16.msra.mxu0 0
    %75 = vmatprep.subr.bf16.mxu0 0
    %76 = vmatpush1.bf16.msra.mxu0 0
    %77 = vmatprep.subr.bf16.mxu0 0
    %78 = vmatpush1.bf16.msra.mxu0 0
    %79 = vmatprep.subr.bf16.mxu0 0
    %80 = vmatpush1.bf16.msra.mxu0 0
    %81 = vmatprep.subr.bf16.mxu0 0
    %82 = vmatpush1.bf16.msra.mxu0 0
    %83 = vmatprep.mubr.bf16.mxu0 0
    %84 = vmatmul.mubr.bf16.gmra.mrb[0].mxu0 %v49
    %v85 = vpop.f32.mrb[0].mxu0
    %v86 = vadd.f32 %v33, %v85
    %v87 = vpop.f32.mrb[0].mxu0
    %v88 = vpop.f32.mrb[0].mxu0
    %v89 = vpop.f32.mrb[0].mxu0
    %90 = vdwg.mxu0
    %v91 = vmax.f32 %v86, 0.0
    %v92 = vpack.c.bf16 %v91, %v91
    %v93 = vld [vmem:[%s3] sm:$0xf]
    %v94 = vld [vmem:[%s3 + $0x4] sm:$0xf]
    %v95 = vld [vmem:[%s3 + $0x8] sm:$0xf]
    %v96 = vld [vmem:[%s3 + $0xc] sm:$0xf]
    %v97 = vld [vmem:[%s3 + $0x10] sm:$0xf]
    %v98 = vld [vmem:[%s3 + $0x14] sm:$0xf]
    %v99 = vld [vmem:[%s3 + $0x18] sm:$0xf]
    %v100 = vld [vmem:[%s3 + $0x1c] sm:$0xf]
    %v101 = vld [vmem:[%s3 + $0x20] sm:$0xf]
    %v102 = vld [vmem:[%s3 + $0x24] sm:$0xf]
    %v103 = vld [vmem:[%s3 + $0x28] sm:$0xf]
    %v104 = vld [vmem:[%s3 + $0x2c] sm:$0xf]
    %v105 = vld [vmem:[%s3 + $0x30] sm:$0xf]
    %v106 = vld [vmem:[%s3 + $0x34] sm:$0xf]
    %v107 = vld [vmem:[%s3 + $0x38] sm:$0xf]
    %v108 = vld [vmem:[%s3 + $0x3c] sm:$0xf]
    %v109 = vld [vmem:[%s4] sm:$0x1]
    %v111 = vlaneseq
    %v112 = vshrl.u32 %v111, 7
    %v113 = vsub.s32 0, %v112
    %v114 = vrot.slane %v109, %v113
    %v132 = vunpack.c.l.b16 %v93
    %v133 = vunpack.c.l.b16 %v94
    %v134 = vunpack.c.l.b16 %v95
    %v135 = vunpack.c.l.b16 %v96
    %v136 = vunpack.c.l.b16 %v97
    %v137 = vunpack.c.l.b16 %v98
    %v138 = vunpack.c.l.b16 %v99
    %v139 = vunpack.c.l.b16 %v100
    %v140 = vunpack.c.l.b16 %v101
    %v141 = vunpack.c.l.b16 %v102
    %v142 = vunpack.c.l.b16 %v103
    %v143 = vunpack.c.l.b16 %v104
    %v144 = vunpack.c.l.b16 %v105
    %v145 = vunpack.c.l.b16 %v106
    %v146 = vunpack.c.l.b16 %v107
    %v147 = vunpack.c.l.b16 %v108
    %v148 = vpack.c.b16 %v133, %v132
    %v149 = vpack.c.b16 %v135, %v134
    %v150 = vpack.c.b16 %v137, %v136
    %v151 = vpack.c.b16 %v139, %v138
    %v152 = vpack.c.b16 %v141, %v140
    %v153 = vpack.c.b16 %v143, %v142
    %v154 = vpack.c.b16 %v145, %v144
    %v155 = vpack.c.b16 %v147, %v146
    %164 = vmatprep.subr.bf16.mxu0 0
    %165 = vmatpush1.bf16.msra.mxu0 %v148
    %166 = vmatprep.subr.bf16.mxu0 0
    %167 = vmatpush1.bf16.msra.mxu0 %v149
    %168 = vmatprep.subr.bf16.mxu0 0
    %169 = vmatpush1.bf16.msra.mxu0 %v150
    %170 = vmatprep.subr.bf16.mxu0 0
    %171 = vmatpush1.bf16.msra.mxu0 %v151
    %172 = vmatprep.subr.bf16.mxu0 0
    %173 = vmatpush1.bf16.msra.mxu0 %v152
    %174 = vmatprep.subr.bf16.mxu0 0
    %175 = vmatpush1.bf16.msra.mxu0 %v153
    %176 = vmatprep.subr.bf16.mxu0 0
    %177 = vmatpush1.bf16.msra.mxu0 %v154
    %178 = vmatprep.subr.bf16.mxu0 0
    %179 = vmatpush1.bf16.msra.mxu0 %v155
    %180 = vmatprep.subr.bf16.mxu0 0
    %181 = vmatpush1.bf16.msra.mxu0 0
    %182 = vmatprep.subr.bf16.mxu0 0
    %183 = vmatpush1.bf16.msra.mxu0 0
    %184 = vmatprep.subr.bf16.mxu0 0
    %185 = vmatpush1.bf16.msra.mxu0 0
    %186 = vmatprep.subr.bf16.mxu0 0
    %187 = vmatpush1.bf16.msra.mxu0 0
    %188 = vmatprep.subr.bf16.mxu0 0
    %189 = vmatpush1.bf16.msra.mxu0 0
    %190 = vmatprep.subr.bf16.mxu0 0
    %191 = vmatpush1.bf16.msra.mxu0 0
    %192 = vmatprep.subr.bf16.mxu0 0
    %193 = vmatpush1.bf16.msra.mxu0 0
    %194 = vmatprep.subr.bf16.mxu0 0
    %195 = vmatpush1.bf16.msra.mxu0 0
    %196 = vmatprep.mubr.bf16.mxu0 0
    %197 = vmatmul.mubr.bf16.gmra.mrb[0].mxu0 %v92
    %v198 = vpop.f32.mrb[0].mxu0
    %v199 = vadd.f32 %v114, %v198
    %v200 = vpop.f32.mrb[0].mxu0
    %v201 = vpop.f32.mrb[0].mxu0
    %v202 = vpop.f32.mrb[0].mxu0
    %203 = vdwg.mxu0
    %vm204 = vcmask 64512
    %v205 = vsel %vm204, %v199, -inf
    %206 = vmax.xlane.f32.xlu0 %v205
    %v207 = vpop.xlane.xlu0 %206
    %v208 = vsub.f32 %v199, %v207
    %v209 = vmul.f32 %v208, 1.442695
    %v210 = vpow.pop %v209
    %v211 = vsel %vm204, %v210, 0.0
    %212 = vadd.xlane.f32.xlu0 %v211
    %v213 = vpop.xlane.xlu0 %212
    %v214 = vlog2.pop %v213
    %v215 = vmul.f32 %v214, 0.6931472
    %v216 = vsub.f32 %v208, %v215
    %217 = vst.msk [vmem:[#allocation2] sm:$0xff] %vm204, %v216
    // Predicated region
    $region22: #{ffnn_forward.1} parent=1 // pred_check
      _
    $region23: #{ffnn_forward.1} parent=1 // pred_check_branch
      %219 = sbr.rel (0) target = $region25
    $region24: #{ffnn_forward.1} parent=1 // pred_region
      %s221 = ssub.s32 128, 128
      %222 = vsyncadd [#allocation3], %s221
      %s224 = sshll.u32 [#allocation2], 4
      %s225 = int_to_ptr.vmem [resolvable:$true] %s224
      %227 = dma.vmem_to_hbm [thread:$0]  %s225, 128, %s5, [#allocation3]
    $region25: #{ffnn_forward.1} parent=1 // pred_fallthru
      _
    // Predicated region
    $region26: #{ffnn_forward.1} parent=1 // pred_check
      _
    $region27: #{ffnn_forward.1} parent=1 // pred_check_branch
      %229 = sbr.rel (0) target = $region29
    $region28: #{ffnn_forward.1} parent=1 // pred_region
      %230 = dma.done [#allocation3], 128
    $region29: #{ffnn_forward.1} parent=1 // pred_fallthru
      _
    %231 = vsyncpa [#allocation3], 1

</llo_original>
